<compile_context>
chip_gen: v5e
topology: v5e:2x2
jax: 0.10.0
libtpu: 0.0.40
codegen_flags: <defaults>
</compile_context>

<pallas_src>
import jax
import jax.numpy as jnp
from jax.experimental import pallas as pl
from jax.experimental.pallas import tpu as pltpu


def _round_up(x, m):
    return ((x + m - 1) // m) * m


def _make_dice_kernel(S, R, num_tiles):
    """Build the per-(sample, feature-tile) kernel.

    S: rows (sublanes) per feature tile (multiple of 8).
    R: true number of valid rows per sample (rows >= R are masked to 0).
    num_tiles: number of feature tiles (grid axis 1 extent).
    """
    need_row_mask = (num_tiles * S) != R

    def kernel(x_ref, t_ref, o_ref, inter_acc, xsum_acc, tsum_acc):
        k = pl.program_id(1)

        # Init the tiny per-sample accumulators (one vreg each) on tile 0.
        @pl.when(k == 0)
        def _():
            inter_acc[...] = jnp.zeros_like(inter_acc)
            xsum_acc[...] = jnp.zeros_like(xsum_acc)
            tsum_acc[...] = jnp.zeros_like(tsum_acc)

        x = x_ref[0].astype(jnp.float32)  # (S, 128)
        t = t_ref[0].astype(jnp.float32)  # (S, 128)

        if need_row_mask:
            # The last feature tile overhangs the true row count; padded VMEM
            # contents are unspecified, so zero them (exact for these sums).
            rows = jax.lax.broadcasted_iota(jnp.int32, (S, 128), 0) + k * S
            valid = rows < R
            zero = jnp.float32(0.0)
            x = jnp.where(valid, x, zero)
            t = jnp.where(valid, t, zero)

        # Fold the (S, 128) tile down to one (8, 128) vreg per quantity with
        # pure VALU adds; reshape is (8,128)-tile aligned -> no data movement.
        xr = x.reshape(S // 8, 8, 128)
        tr = t.reshape(S // 8, 8, 128)
        inter_acc[...] += jnp.sum(jnp.abs(xr * tr), axis=0)
        xsum_acc[...] += jnp.sum(xr, axis=0)
        tsum_acc[...] += jnp.sum(tr, axis=0)

        # Finalize: one XLU reduction of a single vreg per quantity, then the
        # per-sample dice value written as a lane-dense (8, 128) slab.
        @pl.when(k == num_tiles - 1)
        def _():
            smooth = jnp.float32(1.0)
            inter = jnp.sum(inter_acc[...])
            xs = jnp.sum(xsum_acc[...])
            ts = jnp.sum(tsum_acc[...])
            val = 2.0 * (inter + smooth) / (jnp.abs(xs) + jnp.abs(ts) + smooth)
            o_ref[...] = jnp.full(o_ref.shape, val, dtype=o_ref.dtype)

    return kernel


def dice(input_nchw, target_nchw, *, max_rows_per_tile=8192):
    """Equivalent of Dice().forward(input, target) from the PyTorch module."""
    N = target_nchw.shape[0]
    # Flatten exactly like torch .view(N, -1): free row-major reshape.
    x = input_nchw.reshape(N, -1)
    t = target_nchw.reshape(N, -1)
    D = x.shape[1]

    if D % 128 != 0:
        # Fallback only when the feature count is lane-ragged: pad up to a
        # multiple of 8*128 so the (N, R, 128) view exists (zeros are exact
        # for these sums).  This is the only case that copies the inputs.
        # TODO(synk): handle D % 128 != 0 fully in-kernel (manual DMA of the
        # ragged tail) to avoid this copy as well.
        D_pad = _round_up(D, 8 * 128)
        x = jnp.pad(x, ((0, 0), (0, D_pad - D)))
        t = jnp.pad(t, ((0, 0), (0, D_pad - D)))
        D = D_pad

    R = D // 128
    x3 = x.reshape(N, R, 128)  # free reshape (no copy)
    t3 = t.reshape(N, R, 128)

    # Rows per feature tile: multiple of 8 sublanes, as large as allowed so
    # each grid step streams multi-MiB blocks (amortizes per-step overhead on
    # v7x/v6e).  The ragged last tile is masked in-kernel -- no padding.
    max_rows = max(8, _round_up(max_rows_per_tile, 8))
    S = min(max_rows, _round_up(R, 8))
    num_tiles = pl.cdiv(R, S)

    kernel = _make_dice_kernel(S, R, num_tiles)

    out = pl.pallas_call(
        kernel,
        out_shape=jax.ShapeDtypeStruct((N, 8, 128), jnp.float32),
        grid_spec=pltpu.PrefetchScalarGridSpec(
            num_scalar_prefetch=0,
            grid=(N, num_tiles),
            in_specs=[
                pl.BlockSpec((1, S, 128), lambda i, k: (i, k, 0)),
                pl.BlockSpec((1, S, 128), lambda i, k: (i, k, 0)),
            ],
            out_specs=pl.BlockSpec((1, 8, 128), lambda i, k: (i, 0, 0)),
            scratch_shapes=[
                pltpu.VMEM((8, 128), jnp.float32),
                pltpu.VMEM((8, 128), jnp.float32),
                pltpu.VMEM((8, 128), jnp.float32),
            ],
        ),
        compiler_params=pltpu.CompilerParams(
            dimension_semantics=("parallel", "arbitrary"),
            # Actual need: 2 inputs x 2 buffers x block (<= 4 MiB f32 each)
            # + tiny (8,128) accumulators/out ~= 17 MiB.  48 MiB leaves
            # headroom and stays under v7x's 64 MiB physical VMEM.
            vmem_limit_bytes=48 * 1024 * 1024,
        ),
    )(x3, t3)

    per_sample = out[:, 0, 0]  # (N,)
    # Final mean over samples done in plain JAX (tiny).
    return jnp.sum(per_sample) / jnp.float32(N)


def _dice_ref(input_nchw, target_nchw):
    """Pure-JAX reference mirroring the PyTorch forward (f32 math)."""
    N = target_nchw.shape[0]
    smooth = 1.0
    x = input_nchw.reshape(N, -1).astype(jnp.float32)
    t = target_nchw.reshape(N, -1).astype(jnp.float32)
    inter = jnp.abs(x * t)
    dv = 2.0 * (inter.sum(1) + smooth) / (
        jnp.abs(x.sum(1)) + jnp.abs(t.sum(1)) + smooth
    )
    return dv.sum() / N


if __name__ == "__main__":
    key = jax.random.PRNGKey(0)

    def run_check(idx, shape, max_rows_per_tile):
        k1, k2 = jax.random.split(jax.random.fold_in(key, idx))
        x = jax.random.normal(k1, shape, dtype=jnp.float32)
        # target: binary-ish mask (typical for Dice), works for any floats.
        t = (jax.random.uniform(k2, shape) > 0.5).astype(jnp.float32)
        out = dice(x, t, max_rows_per_tile=max_rows_per_tile)
        jax.block_until_ready(out)
        ref = _dice_ref(x, t)
        assert jnp.allclose(out, ref, rtol=1e-5, atol=1e-5), (shape, out, ref)

    # Main example: NCHW, D = 4*16*16 = 1024 (lane-aligned, single tile).
    run_check(0, (2, 4, 16, 16), 8192)
    # Multi-tile accumulation + ragged-row mask: D = 1920 -> R = 15, S = 8.
    run_check(1, (2, 5, 24, 16), 8)
    # Single overhanging tile (S = 16 > R = 15) with in-kernel row mask.
    run_check(2, (2, 5, 24, 16), 8192)
    # Lane-ragged fallback path (D = 3*10*7 = 210, not a multiple of 128).
    run_check(3, (2, 3, 10, 7), 8192)

    print("KERNEL_OK")
</pallas_src>

<mosaic_0001>
module attributes {stable_mosaic.version = 11 : i64} {
  func.func @kernel(%arg0: i32, %arg1: i32, %arg2: memref<1x8x128xf32, #tpu.memory_space<vmem>>, %arg3: memref<1x8x128xf32, #tpu.memory_space<vmem>>, %arg4: memref<1x8x128xf32, #tpu.memory_space<vmem>>, %arg5: memref<8x128xf32, #tpu.memory_space<vmem>>, %arg6: memref<8x128xf32, #tpu.memory_space<vmem>>, %arg7: memref<8x128xf32, #tpu.memory_space<vmem>>) attributes {dimension_semantics = [#tpu.dimension_semantics<parallel>, #tpu.dimension_semantics<arbitrary>], iteration_bounds = array<i64: 2, 1>, scalar_prefetch = 0 : i64, scratch_operands = 3 : i64, tpu.core_type = #tpu.core_type<tc>, window_params = [{transform_indices = @transform_0, window_bounds = array<i64: 1, 8, 128>}, {transform_indices = @transform_1, window_bounds = array<i64: 1, 8, 128>}, {transform_indices = @transform_2, window_bounds = array<i64: 1, 8, 128>}]} {
    %c0_i32 = arith.constant 0 : i32
    %0 = arith.cmpi eq, %arg1, %c0_i32 : i32
    %1 = arith.extui %0 : i1 to i32
    %c0_i32_0 = arith.constant 0 : i32
    %2 = arith.cmpi ne, %1, %c0_i32_0 : i32
    scf.if %2 {
      %cst_22 = arith.constant 0.000000e+00 : f32
      %26 = vector.broadcast %cst_22 : f32 to vector<8x128xf32>
      %c0_23 = arith.constant 0 : index
      %c0_24 = arith.constant 0 : index
      %27 = vector.load %arg5[%c0_23, %c0_24] : memref<8x128xf32, #tpu.memory_space<vmem>>, vector<8x128xf32>
      tpu.vector_store %arg5[%c0_23, %c0_24], %26 {strides = array<i32>} : memref<8x128xf32, #tpu.memory_space<vmem>>, vector<8x128xf32>,
      %cst_25 = arith.constant 0.000000e+00 : f32
      %28 = vector.broadcast %cst_25 : f32 to vector<8x128xf32>
      %c0_26 = arith.constant 0 : index
      %c0_27 = arith.constant 0 : index
      %29 = vector.load %arg6[%c0_26, %c0_27] : memref<8x128xf32, #tpu.memory_space<vmem>>, vector<8x128xf32>
      tpu.vector_store %arg6[%c0_26, %c0_27], %28 {strides = array<i32>} : memref<8x128xf32, #tpu.memory_space<vmem>>, vector<8x128xf32>,
      %cst_28 = arith.constant 0.000000e+00 : f32
      %30 = vector.broadcast %cst_28 : f32 to vector<8x128xf32>
      %c0_29 = arith.constant 0 : index
      %c0_30 = arith.constant 0 : index
      %31 = vector.load %arg7[%c0_29, %c0_30] : memref<8x128xf32, #tpu.memory_space<vmem>>, vector<8x128xf32>
      tpu.vector_store %arg7[%c0_29, %c0_30], %30 {strides = array<i32>} : memref<8x128xf32, #tpu.memory_space<vmem>>, vector<8x128xf32>,
    } else {
    }
    %c0 = arith.constant 0 : index
    %c0_1 = arith.constant 0 : index
    %c0_2 = arith.constant 0 : index
    %3 = vector.load %arg2[%c0, %c0_1, %c0_2] : memref<1x8x128xf32, #tpu.memory_space<vmem>>, vector<1x8x128xf32>
    %4 = vector.shape_cast %3 : vector<1x8x128xf32> to vector<8x128xf32>
    %c0_3 = arith.constant 0 : index
    %c0_4 = arith.constant 0 : index
    %c0_5 = arith.constant 0 : index
    %5 = vector.load %arg3[%c0_3, %c0_4, %c0_5] : memref<1x8x128xf32, #tpu.memory_space<vmem>>, vector<1x8x128xf32>
    %6 = vector.shape_cast %5 : vector<1x8x128xf32> to vector<8x128xf32>
    %7 = vector.shape_cast %4 : vector<8x128xf32> to vector<1x8x128xf32>
    %8 = vector.shape_cast %6 : vector<8x128xf32> to vector<1x8x128xf32>
    %c0_6 = arith.constant 0 : index
    %c0_7 = arith.constant 0 : index
    %9 = vector.load %arg5[%c0_6, %c0_7] : memref<8x128xf32, #tpu.memory_space<vmem>>, vector<8x128xf32>
    %10 = arith.mulf %7, %8 : vector<1x8x128xf32>
    %11 = math.absf %10 : vector<1x8x128xf32>
    %cst = arith.constant dense<0.000000e+00> : vector<8x128xf32>
    %12 = vector.multi_reduction <add>, %11, %cst [0] : vector<1x8x128xf32> to vector<8x128xf32>
    %13 = arith.addf %9, %12 : vector<8x128xf32>
    %c0_8 = arith.constant 0 : index
    %c0_9 = arith.constant 0 : index
    %14 = vector.load %arg5[%c0_8, %c0_9] : memref<8x128xf32, #tpu.memory_space<vmem>>, vector<8x128xf32>
    tpu.vector_store %arg5[%c0_8, %c0_9], %13 {strides = array<i32>} : memref<8x128xf32, #tpu.memory_space<vmem>>, vector<8x128xf32>,
    %c0_10 = arith.constant 0 : index
    %c0_11 = arith.constant 0 : index
    %15 = vector.load %arg6[%c0_10, %c0_11] : memref<8x128xf32, #tpu.memory_space<vmem>>, vector<8x128xf32>
    %cst_12 = arith.constant dense<0.000000e+00> : vector<8x128xf32>
    %16 = vector.multi_reduction <add>, %7, %cst_12 [0] : vector<1x8x128xf32> to vector<8x128xf32>
    %17 = arith.addf %15, %16 : vector<8x128xf32>
    %c0_13 = arith.constant 0 : index
    %c0_14 = arith.constant 0 : index
    %18 = vector.load %arg6[%c0_13, %c0_14] : memref<8x128xf32, #tpu.memory_space<vmem>>, vector<8x128xf32>
    tpu.vector_store %arg6[%c0_13, %c0_14], %17 {strides = array<i32>} : memref<8x128xf32, #tpu.memory_space<vmem>>, vector<8x128xf32>,
    %c0_15 = arith.constant 0 : index
    %c0_16 = arith.constant 0 : index
    %19 = vector.load %arg7[%c0_15, %c0_16] : memref<8x128xf32, #tpu.memory_space<vmem>>, vector<8x128xf32>
    %cst_17 = arith.constant dense<0.000000e+00> : vector<8x128xf32>
    %20 = vector.multi_reduction <add>, %8, %cst_17 [0] : vector<1x8x128xf32> to vector<8x128xf32>
    %21 = arith.addf %19, %20 : vector<8x128xf32>
    %c0_18 = arith.constant 0 : index
    %c0_19 = arith.constant 0 : index
    %22 = vector.load %arg7[%c0_18, %c0_19] : memref<8x128xf32, #tpu.memory_space<vmem>>, vector<8x128xf32>
    tpu.vector_store %arg7[%c0_18, %c0_19], %21 {strides = array<i32>} : memref<8x128xf32, #tpu.memory_space<vmem>>, vector<8x128xf32>,
    %c0_i32_20 = arith.constant 0 : i32
    %23 = arith.cmpi eq, %arg1, %c0_i32_20 : i32
    %24 = arith.extui %23 : i1 to i32
    %c0_i32_21 = arith.constant 0 : i32
    %25 = arith.cmpi ne, %24, %c0_i32_21 : i32
    scf.if %25 {
      %c0_22 = arith.constant 0 : index
      %c0_23 = arith.constant 0 : index
      %26 = vector.load %arg5[%c0_22, %c0_23] : memref<8x128xf32, #tpu.memory_space<vmem>>, vector<8x128xf32>
      %27 = vector.shape_cast %26 : vector<8x128xf32> to vector<1x8x128xf32>
      %cst_24 = arith.constant dense<0.000000e+00> : vector<1xf32>
      %28 = vector.multi_reduction <add>, %27, %cst_24 [1, 2] : vector<1x8x128xf32> to vector<1xf32>
      %29 = vector.shape_cast %28 : vector<1xf32> to vector<1x1x1xf32>
      %30 = vector.extract %29[0, 0, 0] : f32 from vector<1x1x1xf32>
      %c0_25 = arith.constant 0 : index
      %c0_26 = arith.constant 0 : index
      %31 = vector.load %arg6[%c0_25, %c0_26] : memref<8x128xf32, #tpu.memory_space<vmem>>, vector<8x128xf32>
      %32 = vector.shape_cast %31 : vector<8x128xf32> to vector<1x8x128xf32>
      %cst_27 = arith.constant dense<0.000000e+00> : vector<1xf32>
      %33 = vector.multi_reduction <add>, %32, %cst_27 [1, 2] : vector<1x8x128xf32> to vector<1xf32>
      %34 = vector.shape_cast %33 : vector<1xf32> to vector<1x1x1xf32>
      %35 = vector.extract %34[0, 0, 0] : f32 from vector<1x1x1xf32>
      %c0_28 = arith.constant 0 : index
      %c0_29 = arith.constant 0 : index
      %36 = vector.load %arg7[%c0_28, %c0_29] : memref<8x128xf32, #tpu.memory_space<vmem>>, vector<8x128xf32>
      %37 = vector.shape_cast %36 : vector<8x128xf32> to vector<1x8x128xf32>
      %cst_30 = arith.constant dense<0.000000e+00> : vector<1xf32>
      %38 = vector.multi_reduction <add>, %37, %cst_30 [1, 2] : vector<1x8x128xf32> to vector<1xf32>
      %39 = vector.shape_cast %38 : vector<1xf32> to vector<1x1x1xf32>
      %40 = vector.extract %39[0, 0, 0] : f32 from vector<1x1x1xf32>
      %cst_31 = arith.constant 1.000000e+00 : f32
      %41 = arith.addf %30, %cst_31 : f32
      %cst_32 = arith.constant 2.000000e+00 : f32
      %42 = arith.mulf %cst_32, %41 : f32
      %43 = math.absf %35 : f32
      %44 = math.absf %40 : f32
      %45 = arith.addf %43, %44 : f32
      %cst_33 = arith.constant 1.000000e+00 : f32
      %46 = arith.addf %45, %cst_33 : f32
      %47 = arith.divf %42, %46 : f32
      %48 = vector.broadcast %47 : f32 to vector<1x8x128xf32>
      %c0_34 = arith.constant 0 : index
      %c0_35 = arith.constant 0 : index
      %c0_36 = arith.constant 0 : index
      %49 = vector.load %arg4[%c0_34, %c0_35, %c0_36] : memref<1x8x128xf32, #tpu.memory_space<vmem>>, vector<1x8x128xf32>
      tpu.vector_store %arg4[%c0_34, %c0_35, %c0_36], %48 {strides = array<i32>} : memref<1x8x128xf32, #tpu.memory_space<vmem>>, vector<1x8x128xf32>,
    } else {
    }
    return
  }
  func.func @transform_0(%arg0: i32, %arg1: i32) -> (i32, i32, i32) {
    %c0_i32 = arith.constant 0 : i32
    %c0_i32_0 = arith.constant 0 : i32
    return %arg0, %arg1, %c0_i32 : i32, i32, i32
  }
  func.func @transform_1(%arg0: i32, %arg1: i32) -> (i32, i32, i32) {
    %c0_i32 = arith.constant 0 : i32
    %c0_i32_0 = arith.constant 0 : i32
    return %arg0, %arg1, %c0_i32 : i32, i32, i32
  }
  func.func @transform_2(%arg0: i32, %arg1: i32) -> (i32, i32, i32) {
    %c0_i32 = arith.constant 0 : i32
    %c0_i32_0 = arith.constant 0 : i32
    %c0_i32_1 = arith.constant 0 : i32
    return %arg0, %c0_i32, %c0_i32_0 : i32, i32, i32
  }
}

</mosaic_0001>

<llo_original>
// kernel: tpu_custom_call.1
$region0: #{tpu_custom_call.1}
  #allocation0 [shape = 'u32[]', space=smem, size = 0x4, offset = 0x4, fixed_abs, tag = 'smem constant byte address 0x4 - core index']
  #allocation1 [shape = 'u32[72,128]{1,0:T(1,128)}', space=vmem, size = 0x9000, scoped, tag = 'internal scratch']
  #allocation2 [shape = 'f32[8,128]{1,0:T(8,128)}', space=vmem, size = 0x1000, scoped, tag = 'scratch operand']
  #allocation3 [shape = 'f32[8,128]{1,0:T(8,128)}', space=vmem, size = 0x1000, scoped, tag = 'scratch operand']
  #allocation4 [shape = 'f32[8,128]{1,0:T(8,128)}', space=vmem, size = 0x1000, scoped, tag = 'scratch operand']
  %s0 = inlined_call_operand.hbm [shape: f32[2,8,128], index: 0, kind: input, shape index: {}]
  %s1 = inlined_call_operand.hbm [shape: f32[2,8,128], index: 1, kind: input, shape index: {}]
  %s2 = inlined_call_operand.hbm [shape: f32[2,8,128], index: 2, kind: output, shape index: {}]
  %s3 = sld [smem:[#allocation0]]
  $region57: #{tpu_custom_call.1} parent=0
    _
  %s5 = ssub.s32 1, %s3
  %s6 = scalar_select 0, %s5, %s3
  $region1: #{tpu_custom_call.1} parent=0
    #allocation5 [shape = 'u8[8192]{0}', space=vmem, size = 0x2000, scoped, tag = 'input window, operand 0']
    #allocation6 [shape = 's32[2]{0}', space=sflag, size = 0x8, scoped, tag = 'scoped memory for tpu_custom_call.1']
    #allocation7 [shape = 's32[2]{0}', space=sflag, size = 0x8, scoped, tag = 'scoped memory for tpu_custom_call.1']
    #allocation8 [shape = 'u8[8192]{0}', space=vmem, size = 0x2000, scoped, tag = 'input window, operand 1']
    #allocation9 [shape = 's32[2]{0}', space=sflag, size = 0x8, scoped, tag = 'scoped memory for tpu_custom_call.1']
    #allocation10 [shape = 'u8[8192]{0}', space=vmem, size = 0x2000, scoped, tag = 'output window, operand 0']
    %7 = vsyncpa [#allocation6], 0
    %s8 = scalar_lea.sflag [#allocation6], 1
    %9 = vsyncpa %s8, 0
    %10 = vsyncpa [#allocation9], 0
    %s11 = scalar_lea.sflag [#allocation9], 1
    %12 = vsyncpa %s11, 0
    %13 = vsyncpa [#allocation7], 0
    %s14 = scalar_lea.sflag [#allocation7], 1
    %15 = vsyncpa %s14, 0
    loop: start=0, step=1, limit=4
    $region2: #{tpu_custom_call.1} parent=1 // loop_pre_header
      _
    $region3: #{tpu_custom_call.1} parent=1 // loop_header
      %s17 = sphi 0, %s21
      %p18 = scmp.ge.s32.totalorder %s17, 4
      %s24 = sphi 0, %s36
      %s25 = sphi 0, %s32
      %s26 = sphi 0, %s24
      %s27 = sphi 0, %s25
      %s28 = sphi 0, %s26
      %s29 = sphi 0, %s27
      %s41 = sphi 0, %s43
      %s44 = sphi 0, %s41
      %s45 = sphi 0, %s44
      %s61 = sphi 0, %s45
      %s69 = sphi 0, %s71
      %s72 = sphi 0, %s69
      %s73 = sphi 0, %s72
      %s89 = sphi 0, %s73
      %s95 = sphi 0, %s97
      %s98 = sphi 0, %s95
      %s99 = sphi 0, %s98
      %s115 = sphi 0, %s99
    $region4: #{tpu_custom_call.1} parent=1 // loop_header_branch
      %20 = sbr.rel (%p18) target = $region8
    $region5: #{tpu_custom_call.1} parent=1 // loop_body
      %s22 = ssub.s32 %s17, 1
      %s23 = ssub.s32 %s17, 2
      %s30 = sadd.s32 1, %s25
      %p31 = scmp.ge.s32.totalorder %s30, 1
      %s32 = scalar_select %p31, 0, %s30
      %s33 = sadd.s32 1, %s24
      %s34 = scalar_select %p31, %s33, %s24
      %p35 = scmp.ge.s32.totalorder %s34, 2
      %s36 = scalar_select %p35, 0, %s34
      %s37 = ssub.s32 %s24, %s36
      %s38 = ssub.s32 %s25, %s32
      %s39 = sor.u32 %s37, %s38
      %p40 = scmp.eq.s32.totalorder %s39, 0
      %s42 = sadd.s32 %s41, 1
      %s43 = scalar_select %p40, %s41, %s42
      %p46 = pneg %p40
      %p47 = scmp.eq.s32.totalorder %s17, 1
      %p48 = por %p46, %p47
      %p49 = scmp.ne.s32.totalorder %s41, %s44
      %p50 = scmp.eq.s32.totalorder %s17, 0
      %p51 = por %p49, %p50
      %p52 = scmp.ne.s32.totalorder %s41, %s44
      %p53 = scmp.eq.s32.totalorder %s22, 1
      %p54 = por %p52, %p53
      %p55 = scmp.ne.s32.totalorder %s44, %s45
      %p56 = scmp.eq.s32.totalorder %s22, 0
      %p57 = por %p55, %p56
      %p58 = scmp.ne.s32.totalorder %s44, %s45
      %p59 = scmp.eq.s32.totalorder %s23, 1
      %p60 = por %p58, %p59
      %p62 = scmp.ne.s32.totalorder %s45, %s61
      %p63 = scmp.eq.s32.totalorder %s23, 0
      %p64 = por %p62, %p63
      %s65 = ssub.s32 %s24, %s36
      %s66 = ssub.s32 %s25, %s32
      %s67 = sor.u32 %s65, %s66
      %p68 = scmp.eq.s32.totalorder %s67, 0
      %s70 = sadd.s32 %s69, 1
      %s71 = scalar_select %p68, %s69, %s70
      %p74 = pneg %p68
      %p75 = scmp.eq.s32.totalorder %s17, 1
      %p76 = por %p74, %p75
      %p77 = scmp.ne.s32.totalorder %s69, %s72
      %p78 = scmp.eq.s32.totalorder %s17, 0
      %p79 = por %p77, %p78
      %p80 = scmp.ne.s32.totalorder %s69, %s72
      %p81 = scmp.eq.s32.totalorder %s22, 1
      %p82 = por %p80, %p81
      %p83 = scmp.ne.s32.totalorder %s72, %s73
      %p84 = scmp.eq.s32.totalorder %s22, 0
      %p85 = por %p83, %p84
      %p86 = scmp.ne.s32.totalorder %s72, %s73
      %p87 = scmp.eq.s32.totalorder %s23, 1
      %p88 = por %p86, %p87
      %p90 = scmp.ne.s32.totalorder %s73, %s89
      %p91 = scmp.eq.s32.totalorder %s23, 0
      %p92 = por %p90, %p91
      %s93 = ssub.s32 %s24, %s36
      %p94 = scmp.eq.s32.totalorder %s93, 0
      %s96 = sadd.s32 %s95, 1
      %s97 = scalar_select %p94, %s95, %s96
      %p100 = pneg %p94
      %p101 = scmp.eq.s32.totalorder %s17, 1
      %p102 = por %p100, %p101
      %p103 = scmp.ne.s32.totalorder %s95, %s98
      %p104 = scmp.eq.s32.totalorder %s17, 0
      %p105 = por %p103, %p104
      %p106 = scmp.ne.s32.totalorder %s95, %s98
      %p107 = scmp.eq.s32.totalorder %s22, 1
      %p108 = por %p106, %p107
      %p109 = scmp.ne.s32.totalorder %s98, %s99
      %p110 = scmp.eq.s32.totalorder %s22, 0
      %p111 = por %p109, %p110
      %p112 = scmp.ne.s32.totalorder %s98, %s99
      %p113 = scmp.eq.s32.totalorder %s23, 1
      %p114 = por %p112, %p113
      %p116 = scmp.ne.s32.totalorder %s99, %s115
      %p117 = scmp.eq.s32.totalorder %s23, 0
      %p118 = por %p116, %p117
      %p119 = scmp.le.s32.totalorder 1, %s17
      %p120 = scmp.lt.s32.totalorder %s17, 3
      %p121 = pnand %p119, %p120
      %p122 = pneg %p121
      // Predicated region
      $region9: #{tpu_custom_call.1} parent=5 // pred_check
        _
      $region10: #{tpu_custom_call.1} parent=5 // pred_check_branch
        %124 = sbr.rel (%p121) target = $region12
      $region11: #{tpu_custom_call.1} parent=5 // pred_region
        %s125 = ssub.s32 %s17, 1
      $region12: #{tpu_custom_call.1} parent=5 // pred_fallthru
        _
      %p126 = scmp.lt.s32.totalorder %s17, 2
      // Predicated region
      $region13: #{tpu_custom_call.1} parent=5 // pred_check
        %p127 = pneg %p126
      $region14: #{tpu_custom_call.1} parent=5 // pred_check_branch
        %129 = sbr.rel (%p127) target = $region16
      $region15: #{tpu_custom_call.1} parent=5 // pred_region
        // Predicated region
        $region17: #{tpu_custom_call.1} parent=15 // pred_check
          %p130 = pneg %p51
        $region18: #{tpu_custom_call.1} parent=15 // pred_check_branch
          %132 = sbr.rel (%p130) target = $region20
        $region19: #{tpu_custom_call.1} parent=15 // pred_region
          %s133 = sand.u32 %s41, 1
          %s134 = scalar_lea.sflag [#allocation6], %s133
          %s135 = sand.u32 %s41, 1
          %s136 = smul.addr %s135, 8
          %s137 = scalar_lea.vmem [#allocation5], %s136
          %139 = vsyncadd %s134, 0
          %s140 = sadd.s32 %s25, %s24
          %s141 = smul.addr %s140, 8
          %s142 = scalar_lea.hbm %s0, %s141
          %s144 = sshll.u32 %s142, 4
          %s145 = int_to_ptr.hbm [resolvable:$true] %s144
          %s146 = sshll.u32 %s137, 4
          %s147 = int_to_ptr.vmem [resolvable:$true] %s146
          %149 = dma.hbm_to_vmem [thread:$0]  %s145, 128, %s147, %s134
        $region20: #{tpu_custom_call.1} parent=15 // pred_fallthru
          _
        // Predicated region
        $region21: #{tpu_custom_call.1} parent=15 // pred_check
          %p150 = pneg %p79
        $region22: #{tpu_custom_call.1} parent=15 // pred_check_branch
          %152 = sbr.rel (%p150) target = $region24
        $region23: #{tpu_custom_call.1} parent=15 // pred_region
          %s153 = sand.u32 %s69, 1
          %s154 = scalar_lea.sflag [#allocation9], %s153
          %s155 = sand.u32 %s69, 1
          %s156 = smul.addr %s155, 8
          %s157 = scalar_lea.vmem [#allocation8], %s156
          %159 = vsyncadd %s154, 0
          %s160 = sadd.s32 %s25, %s24
          %s161 = smul.addr %s160, 8
          %s162 = scalar_lea.hbm %s1, %s161
          %s164 = sshll.u32 %s162, 4
          %s165 = int_to_ptr.hbm [resolvable:$true] %s164
          %s166 = sshll.u32 %s157, 4
          %s167 = int_to_ptr.vmem [resolvable:$true] %s166
          %169 = dma.hbm_to_vmem [thread:$0]  %s165, 128, %s167, %s154
        $region24: #{tpu_custom_call.1} parent=15 // pred_fallthru
          _
      $region16: #{tpu_custom_call.1} parent=5 // pred_fallthru
        _
      %p170 = scmp.le.s32.totalorder 1, %s17
      %p171 = scmp.lt.s32.totalorder %s17, 3
      %p172 = pnand %p170, %p171
      %p173 = pneg %p172
      // Predicated region
      $region25: #{tpu_custom_call.1} parent=5 // pred_check
        _
      $region26: #{tpu_custom_call.1} parent=5 // pred_check_branch
        %175 = sbr.rel (%p172) target = $region28
      $region27: #{tpu_custom_call.1} parent=5 // pred_region
        %s176 = ssub.s32 %s17, 1
        %s177 = sand.u32 %s44, 1
        %s178 = scalar_lea.sflag [#allocation6], %s177
        %s179 = sand.u32 %s44, 1
        %s180 = smul.addr %s179, 8
        %s181 = scalar_lea.vmem [#allocation5], %s180
        // Predicated region
        $region29: #{tpu_custom_call.1} parent=27 // pred_check
          %p182 = pneg %p57
        $region30: #{tpu_custom_call.1} parent=27 // pred_check_branch
          %184 = sbr.rel (%p182) target = $region32
        $region31: #{tpu_custom_call.1} parent=27 // pred_region
          %186 = dma.done %s178, 128
        $region32: #{tpu_custom_call.1} parent=27 // pred_fallthru
          _
        %s187 = sand.u32 %s72, 1
        %s188 = scalar_lea.sflag [#allocation9], %s187
        %s189 = sand.u32 %s72, 1
        %s190 = smul.addr %s189, 8
        %s191 = scalar_lea.vmem [#allocation8], %s190
        // Predicated region
        $region33: #{tpu_custom_call.1} parent=27 // pred_check
          %p192 = pneg %p85
        $region34: #{tpu_custom_call.1} parent=27 // pred_check_branch
          %194 = sbr.rel (%p192) target = $region36
        $region35: #{tpu_custom_call.1} parent=27 // pred_region
          %196 = dma.done %s188, 128
        $region36: #{tpu_custom_call.1} parent=27 // pred_fallthru
          _
        %s197 = sand.u32 %s44, 1
        %s198 = scalar_lea.sflag [#allocation6], %s197
        %s199 = sand.u32 %s44, 1
        %s200 = smul.addr %s199, 8
        %s201 = scalar_lea.vmem [#allocation5], %s200
        %p202 = pneg %p57
        %p203 = pneg %p54
        %s204 = sand.u32 %s72, 1
        %s205 = scalar_lea.sflag [#allocation9], %s204
        %s206 = sand.u32 %s72, 1
        %s207 = smul.addr %s206, 8
        %s208 = scalar_lea.vmem [#allocation8], %s207
        %p209 = pneg %p85
        %p210 = pneg %p82
        %p211 = pneg %p111
        %p212 = pneg %p108
        %s213 = sand.u32 %s98, 1
        %s214 = scalar_lea.sflag [#allocation7], %s213
        %s215 = sand.u32 %s98, 1
        %s216 = smul.addr %s215, 8
        %s217 = scalar_lea.vmem [#allocation10], %s216
        %p218 = scmp.eq.s32.totalorder %s27, 0
        // Predicated region
        $region37: #{tpu_custom_call.1} parent=27 // pred_check
          %p219 = pneg %p218
        $region38: #{tpu_custom_call.1} parent=27 // pred_check_branch
          %221 = sbr.rel (%p219) target = $region40
        $region39: #{tpu_custom_call.1} parent=27 // pred_region
          %222 = vst [vmem:[#allocation2] sm:$0xff] 0.0
          %223 = vst [vmem:[#allocation3] sm:$0xff] 0.0
          %224 = vst [vmem:[#allocation4] sm:$0xff] 0.0
        $region40: #{tpu_custom_call.1} parent=27 // pred_fallthru
          _
        %v225 = vld [vmem:[%s181] sm:$0xff]
        %v226 = vld [vmem:[%s191] sm:$0xff]
        %v227 = vld [vmem:[#allocation2] sm:$0xff]
        %v228 = vmul.f32 %v225, %v226
        %v229 = vand.u32 2147483647, %v228
        %v230 = vadd.f32 %v229, 0.0
        %v231 = vadd.f32 %v227, %v230
        %232 = vst [vmem:[#allocation2] sm:$0xff] %v231
        %v233 = vld [vmem:[#allocation3] sm:$0xff]
        %v234 = vadd.f32 %v225, 0.0
        %v235 = vadd.f32 %v233, %v234
        %236 = vst [vmem:[#allocation3] sm:$0xff] %v235
        %v237 = vld [vmem:[#allocation4] sm:$0xff]
        %v238 = vadd.f32 %v226, 0.0
        %v239 = vadd.f32 %v237, %v238
        %240 = vst [vmem:[#allocation4] sm:$0xff] %v239
        // Predicated region
        $region41: #{tpu_custom_call.1} parent=27 // pred_check
          %p241 = pneg %p218
        $region42: #{tpu_custom_call.1} parent=27 // pred_check_branch
          %243 = sbr.rel (%p241) target = $region44
        $region43: #{tpu_custom_call.1} parent=27 // pred_region
          %v244 = vld [vmem:[#allocation2] sm:$0xff]
          %245 = vadd.xlane.f32.xlu0 %v244
          %v246 = vpop.xlane.xlu0 %245
          %v247 = vrot.slane %v246, 4
          %v248 = vadd.f32 %v246, %v247
          %v249 = vrot.slane %v248, 2
          %v250 = vadd.f32 %v248, %v249
          %v251 = vrot.slane %v250, 1
          %v252 = vadd.f32 %v250, %v251
          %s253 = vtos %v252
          %v254 = vld [vmem:[#allocation3] sm:$0xff]
          %255 = vadd.xlane.f32.xlu0 %v254
          %v256 = vpop.xlane.xlu0 %255
          %v257 = vrot.slane %v256, 4
          %v258 = vadd.f32 %v256, %v257
          %v259 = vrot.slane %v258, 2
          %v260 = vadd.f32 %v258, %v259
          %v261 = vrot.slane %v260, 1
          %v262 = vadd.f32 %v260, %v261
          %s263 = vtos %v262
          %v264 = vld [vmem:[#allocation4] sm:$0xff]
          %265 = vadd.xlane.f32.xlu0 %v264
          %v266 = vpop.xlane.xlu0 %265
          %v267 = vrot.slane %v266, 4
          %v268 = vadd.f32 %v266, %v267
          %v269 = vrot.slane %v268, 2
          %v270 = vadd.f32 %v268, %v269
          %v271 = vrot.slane %v270, 1
          %v272 = vadd.f32 %v270, %v271
          %s273 = vtos %v272
          %s274 = sadd.f32 %s253, 1.0
          %s275 = smul.f32 %s274, 2.0
          %s276 = sand.u32 2147483647, %s263
          %s277 = sand.u32 2147483647, %s273
          %s278 = sadd.f32 %s276, %s277
          %s279 = sadd.f32 %s278, 1.0
          %v280 = vstv %s279
          %v281 = vrcp.pop %v280
          %v282 = vmul.f32 %v280, %v281
          %v283 = vsub.f32 1.0, %v282
          %v284 = vmul.f32 %v281, %v283
          %v285 = vadd.f32 %v281, %v284
          %vm286 = vweird.f32 %v280
          %vm287 = vweird.f32 %v281
          %vm288 = vmor %vm286, %vm287
          %v289 = vsel %vm288, %v281, %v285
          %v290 = vand.u32 2147483647, %v280
          %vm291 = vcmp.eq.f32.partialorder %v290, 8.507059e+37
          %v292 = vand.u32 %v280, 2147483648
          %v293 = vor.u32 1.1754944e-38, %v292
          %v294 = vsel %vm291, %v293, %v289
          %s295 = vtos %v294
          %s296 = smul.f32 %s275, %s295
          %v297 = vstv %s296
          %298 = vst [vmem:[%s217] sm:$0xff] %v297
        $region44: #{tpu_custom_call.1} parent=27 // pred_fallthru
          _
        %s299 = sand.u32 %s98, 1
        %s300 = scalar_lea.sflag [#allocation7], %s299
        %s301 = sand.u32 %s98, 1
        %s302 = smul.addr %s301, 8
        %s303 = scalar_lea.vmem [#allocation10], %s302
        // Predicated region
        $region45: #{tpu_custom_call.1} parent=27 // pred_check
          %p304 = pneg %p108
        $region46: #{tpu_custom_call.1} parent=27 // pred_check_branch
          %306 = sbr.rel (%p304) target = $region48
        $region47: #{tpu_custom_call.1} parent=27 // pred_region
          %308 = vsyncadd %s300, 0
          %s309 = smul.addr %s26, 8
          %s310 = scalar_lea.hbm %s2, %s309
          %s312 = sshll.u32 %s303, 4
          %s313 = int_to_ptr.vmem [resolvable:$true] %s312
          %s314 = sshll.u32 %s310, 4
          %s315 = int_to_ptr.hbm [resolvable:$true] %s314
          %317 = dma.vmem_to_hbm [thread:$0]  %s313, 128, %s315, %s300
        $region48: #{tpu_custom_call.1} parent=27 // pred_fallthru
          _
      $region28: #{tpu_custom_call.1} parent=5 // pred_fallthru
        _
      %p318 = scmp.le.s32.totalorder 2, %s17
      // Predicated region
      $region49: #{tpu_custom_call.1} parent=5 // pred_check
        %p319 = pneg %p318
      $region50: #{tpu_custom_call.1} parent=5 // pred_check_branch
        %321 = sbr.rel (%p319) target = $region52
      $region51: #{tpu_custom_call.1} parent=5 // pred_region
        %s322 = ssub.s32 %s17, 2
        // Predicated region
        $region53: #{tpu_custom_call.1} parent=51 // pred_check
          %p323 = pneg %p114
        $region54: #{tpu_custom_call.1} parent=51 // pred_check_branch
          %325 = sbr.rel (%p323) target = $region56
        $region55: #{tpu_custom_call.1} parent=51 // pred_region
          %s326 = sand.u32 %s99, 1
          %s327 = scalar_lea.sflag [#allocation7], %s326
          %s328 = sand.u32 %s99, 1
          %s329 = smul.addr %s328, 8
          %s330 = scalar_lea.vmem [#allocation10], %s329
          %332 = dma.done %s327, 128
        $region56: #{tpu_custom_call.1} parent=51 // pred_fallthru
          _
      $region52: #{tpu_custom_call.1} parent=5 // pred_fallthru
        _
    $region6: #{tpu_custom_call.1} parent=1 // loop_footer
      %s21 = sadd.s32 1, %s17
    $region7: #{tpu_custom_call.1} parent=1 // loop_footer_branch
      %16 = sbr.rel target = $region3
    $region8: #{tpu_custom_call.1} parent=1 // loop_exit
      _
    %333 = vsyncpa [#allocation6], 1
    %s334 = scalar_lea.sflag [#allocation6], 1
    %335 = vsyncpa %s334, 1
    %336 = vsyncpa [#allocation9], 1
    %s337 = scalar_lea.sflag [#allocation9], 1
    %338 = vsyncpa %s337, 1
    %339 = vsyncpa [#allocation7], 1
    %s340 = scalar_lea.sflag [#allocation7], 1
    %341 = vsyncpa %s340, 1

</llo_original>
